<compile_context>
chip_gen: v7x
topology: tpu7x:2x2x1
jax: 0.10.0
libtpu: 0.0.40
codegen_flags: <defaults>
</compile_context>

<pallas_src>
import math

import jax
import jax.numpy as jnp
from jax.experimental import pallas as pl
from jax.experimental.pallas import tpu as pltpu

# ----------------------------- module config --------------------------------
D_MODEL = 32
MAX_SEQ_LENGTH = 5000
BATCH = 2
SEQ = 8

_LANES = 128
# Lane-dense seq tile for the scaled path: 1024 * 128 f32 elements per row
# (= 512 KiB per batch-row per buffer) — >= 512 lanes keeps ~85% of HBM
# roofline while leaving ample double-buffering headroom even on v7x (64 MiB).
_TILE_COLS = 1024 * _LANES
# Below this activation size the single straight-line call is strictly better
# (the whole problem is dispatch-overhead bound anyway).
_TILED_THRESHOLD_BYTES = 4 * 1024 * 1024


# ------------------------------- kernel -------------------------------------
def _pe_add_kernel(x_ref, pe_ref, o_ref):
    """o = x + pe.  x/o: (B, cols) lane-dense slab, pe: (1, cols) broadcast."""
    o_ref[...] = x_ref[...] + pe_ref[...].astype(x_ref.dtype)


# ------------------------- pallas_call wrappers ------------------------------
def _single_block_call(x2d, pe2d):
    """Whole problem in one straight-line invocation (no grid, no pipeline)."""
    return pl.pallas_call(
        _pe_add_kernel,
        out_shape=jax.ShapeDtypeStruct(x2d.shape, x2d.dtype),
        in_specs=[
            pl.BlockSpec(memory_space=pltpu.MemorySpace.VMEM),
            pl.BlockSpec(memory_space=pltpu.MemorySpace.VMEM),
        ],
        out_specs=pl.BlockSpec(memory_space=pltpu.MemorySpace.VMEM),
        input_output_aliases={0: 0},   # add in place on the activation slab
    )(x2d, pe2d)


def _tiled_call(x2d, pe2d, tile_cols):
    """Seq-tiled, lane-dense, parallel grid — for production-sized inputs."""
    b, cols = x2d.shape
    grid = (cols // tile_cols,)
    return pl.pallas_call(
        _pe_add_kernel,
        grid=grid,
        in_specs=[
            pl.BlockSpec((b, tile_cols), lambda j: (0, j)),
            pl.BlockSpec((1, tile_cols), lambda j: (0, j)),
        ],
        out_specs=pl.BlockSpec((b, tile_cols), lambda j: (0, j)),
        out_shape=jax.ShapeDtypeStruct((b, cols), x2d.dtype),
        input_output_aliases={0: 0},
        compiler_params=pltpu.CompilerParams(
            dimension_semantics=("parallel",),        # shard across v7x's 2 TCs
            vmem_limit_bytes=64 * 1024 * 1024,
        ),
    )(x2d, pe2d)


@jax.jit
def positional_encoding_forward(x, pe_table):
    """x: (B, S, D).  pe_table: (MAX_SEQ_LENGTH, D) float32 buffer.

    Matches PyTorch forward:  x + pe[None, :S, :].
    """
    b, s, d = x.shape
    sd = s * d

    # Pre-slice the PE operand to the tiny slab actually needed (cheap XLA
    # slice); cast explicitly to x.dtype so bf16 models behave intentionally.
    pe2d = pe_table[:s].reshape(1, sd).astype(x.dtype)

    # Lane-dense view of the activation: (B, S*D); contiguous reshape is free.
    x2d = x.reshape(b, sd)

    total_bytes = b * sd * x.dtype.itemsize
    if total_bytes > _TILED_THRESHOLD_BYTES and sd % _TILE_COLS == 0:
        out2d = _tiled_call(x2d, pe2d, _TILE_COLS)
    else:
        out2d = _single_block_call(x2d, pe2d)

    return out2d.reshape(b, s, d)


# --------------------- PE table (registered buffer) --------------------------
def make_pe_table(d_model, max_seq_length=5000):
    """Matches the PyTorch buffer construction exactly (float32)."""
    position = jnp.arange(max_seq_length, dtype=jnp.float32)[:, None]
    div_term = jnp.exp(
        jnp.arange(0, d_model, 2, dtype=jnp.float32)
        * (-math.log(10000.0) / d_model)
    )
    angles = position * div_term                       # (max_seq, d_model//2)
    pe = jnp.zeros((max_seq_length, d_model), jnp.float32)
    pe = pe.at[:, 0::2].set(jnp.sin(angles))
    pe = pe.at[:, 1::2].set(jnp.cos(angles))
    return pe


# --------------------------------- main --------------------------------------
if __name__ == "__main__":
    key = jax.random.PRNGKey(0)
    x = jax.random.normal(key, (BATCH, SEQ, D_MODEL), jnp.float32)

    pe = make_pe_table(D_MODEL, MAX_SEQ_LENGTH)        # (5000, 32) f32 buffer

    out = positional_encoding_forward(x, pe)
    out = jax.block_until_ready(out)

    # Reference: x + pe[:, :S]  (PyTorch forward semantics).
    ref = x + pe[None, :SEQ, :]
    assert out.shape == (BATCH, SEQ, D_MODEL)
    assert bool(jnp.allclose(out, ref, atol=1e-6, rtol=1e-6))
    print("KERNEL_OK")
</pallas_src>

<mosaic_0001>
module attributes {stable_mosaic.version = 11 : i64} {
  func.func @_pe_add_kernel(%arg0: memref<2x256xf32, #tpu.memory_space<vmem>>, %arg1: memref<1x256xf32, #tpu.memory_space<vmem>>, %arg2: memref<2x256xf32, #tpu.memory_space<vmem>>) attributes {dimension_semantics = [], scalar_prefetch = 0 : i64, scratch_operands = 0 : i64, tpu.core_type = #tpu.core_type<tc>} {
    %c0 = arith.constant 0 : index
    %c0_0 = arith.constant 0 : index
    %0 = vector.load %arg0[%c0, %c0_0] : memref<2x256xf32, #tpu.memory_space<vmem>>, vector<2x256xf32>
    %c0_1 = arith.constant 0 : index
    %c0_2 = arith.constant 0 : index
    %1 = vector.load %arg1[%c0_1, %c0_2] : memref<1x256xf32, #tpu.memory_space<vmem>>, vector<1x256xf32>
    %2 = vector.broadcast %1 : vector<1x256xf32> to vector<2x256xf32>
    %3 = arith.addf %0, %2 : vector<2x256xf32>
    %c0_3 = arith.constant 0 : index
    %c0_4 = arith.constant 0 : index
    %4 = vector.load %arg2[%c0_3, %c0_4] : memref<2x256xf32, #tpu.memory_space<vmem>>, vector<2x256xf32>
    tpu.vector_store %arg2[%c0_3, %c0_4], %3 {strides = array<i32>} : memref<2x256xf32, #tpu.memory_space<vmem>>, vector<2x256xf32>,
    return
  }
}

</mosaic_0001>

<llo_original>
// kernel: positional_encoding_forward.1
$region0: #{positional_encoding_forward.1}
  #allocation0 [shape = 'u32[]', space=smem, size = 0x4, offset = 0x4, fixed_abs, tag = 'smem constant byte address 0x4 - core index']
  #allocation1 [shape = 'u32[144,128]{1,0:T(1,128)}', space=vmem, size = 0x12000, scoped, tag = 'internal scratch']
  %s0 = inlined_call_operand.vmem [shape: f32[2,256], index: 0, kind: input, shape index: {}, may-alias: {0,2}]
  %s1 = inlined_call_operand.vmem [shape: f32[1,256], index: 1, kind: input, shape index: {}]
  %s2 = inlined_call_operand.vmem [shape: f32[2,256], index: 2, kind: output, shape index: {}, may-alias: {0,2}]
  %s3 = sld [smem:[#allocation0]]
  $region18: #{positional_encoding_forward.1} parent=0
    _
  %s5 = ssub.s32 1, %s3
  %s6 = scalar_select 0, %s5, %s3
  // Predicated region
  $region2: #{positional_encoding_forward.1} parent=0 // pred_check
    _
  $region3: #{positional_encoding_forward.1} parent=0 // pred_check_branch
    %8 = sbr.rel (0) target = $region5
  $region4: #{positional_encoding_forward.1} parent=0 // pred_region
    _
  $region5: #{positional_encoding_forward.1} parent=0 // pred_fallthru
    _
  // Predicated region
  $region6: #{positional_encoding_forward.1} parent=0 // pred_check
    _
  $region7: #{positional_encoding_forward.1} parent=0 // pred_check_branch
    %10 = sbr.rel (0) target = $region9
  $region8: #{positional_encoding_forward.1} parent=0 // pred_region
    _
  $region9: #{positional_encoding_forward.1} parent=0 // pred_fallthru
    _
  %v11 = vld [vmem:[%s0] sm:$0xf]
  %v12 = vld [vmem:[%s1] sm:$0x3]
  %v14 = vlaneseq
  %v15 = vshrl.u32 %v14, 7
  %v16 = vsub.s32 0, %v15
  %v17 = vrot.slane %v12, %v16
  %v18 = vlaneseq
  %v19 = vshrl.u32 %v18, 7
  %v20 = vsub.s32 1, %v19
  %v21 = vrot.slane %v12, %v20
  %v22 = vcombine.low %v17, %v21
  %v24 = vunpack.c.l.s4 1983009808
  %v25 = vunpack.c.0.s8 %v24
  %v26 = vlaneseq
  %v27 = vshrl.u32 %v26, 7
  %v28 = vsub.s32 %v25, %v27
  %v29 = vrot.slane %v22, %v28
  %v31 = vadd.f32 %v11, %v29
  %32 = vst [vmem:[%s2] sm:$0xf] %v31
  // Predicated region
  $region10: #{positional_encoding_forward.1} parent=0 // pred_check
    _
  $region11: #{positional_encoding_forward.1} parent=0 // pred_check_branch
    %34 = sbr.rel (0) target = $region13
  $region12: #{positional_encoding_forward.1} parent=0 // pred_region
    _
  $region13: #{positional_encoding_forward.1} parent=0 // pred_fallthru
    _
  // Predicated region
  $region14: #{positional_encoding_forward.1} parent=0 // pred_check
    _
  $region15: #{positional_encoding_forward.1} parent=0 // pred_check_branch
    %36 = sbr.rel (0) target = $region17
  $region16: #{positional_encoding_forward.1} parent=0 // pred_region
    _
  $region17: #{positional_encoding_forward.1} parent=0 // pred_fallthru
    _

</llo_original>
